<compile_context>
chip_gen: v5e
topology: v5e:2x2
jax: 0.10.0
libtpu: 0.0.40
codegen_flags: <defaults>
</compile_context>

<pallas_src>
import jax
import jax.numpy as jnp
from jax.experimental import pallas as pl
from jax.experimental.pallas import tpu as pltpu


def _fold_partial_sum(x, sub, lane):
    """Fold a (TH, W) f32 tile to (sub, lane) using only aligned slice adds (VPU)."""
    th, w = x.shape
    acc = x[:, :lane]
    for j in range(1, w // lane):
        acc = acc + x[:, j * lane:(j + 1) * lane]
    out = acc[:sub, :]
    for i in range(1, th // sub):
        out = out + acc[i * sub:(i + 1) * sub, :]
    return out


def _edge_tv_kernel(d_ref, r_ref, sx_ref, sy_ref):
    d = d_ref[0].astype(jnp.float32)         # (TH, W)
    r0 = r_ref[0, 0].astype(jnp.float32)     # (TH, W)
    r1 = r_ref[0, 1].astype(jnp.float32)
    r2 = r_ref[0, 2].astype(jnp.float32)

    th, w = d.shape
    sub, lane = sx_ref.shape[2], sx_ref.shape[3]
    neg_third = jnp.float32(-1.0 / 3.0)

    # ---- x direction (lane axis): sliced diffs, pad last column with zeros ----
    adx = jnp.abs(d[:, 1:] - d[:, :-1])                              # (TH, W-1)
    aix = (jnp.abs(r0[:, 1:] - r0[:, :-1])
           + jnp.abs(r1[:, 1:] - r1[:, :-1])
           + jnp.abs(r2[:, 1:] - r2[:, :-1])) * neg_third            # -mean_c|dx rgb|
    zcol = jnp.zeros((th, 1), jnp.float32)
    gdx = jnp.concatenate([adx, zcol], axis=1)                       # last col -> 0
    gix_neg = jnp.concatenate([aix, zcol], axis=1)                   # exp(0)=1, x0 anyway
    wx = gdx * jnp.exp(gix_neg)

    # ---- y direction (sublane axis): sliced diffs, pad last row with zeros ----
    ady = jnp.abs(d[1:, :] - d[:-1, :])                              # (TH-1, W)
    aiy = (jnp.abs(r0[1:, :] - r0[:-1, :])
           + jnp.abs(r1[1:, :] - r1[:-1, :])
           + jnp.abs(r2[1:, :] - r2[:-1, :])) * neg_third
    zrow = jnp.zeros((1, w), jnp.float32)
    gdy = jnp.concatenate([ady, zrow], axis=0)                       # last row -> 0
    giy_neg = jnp.concatenate([aiy, zrow], axis=0)
    wy = gdy * jnp.exp(giy_neg)

    # ---- lane-dense partial sums; full reduction deferred to outside the kernel ----
    sx_ref[0, 0] = _fold_partial_sum(wx, sub, lane)
    sy_ref[0, 0] = _fold_partial_sum(wy, sub, lane)


def _pick_tile_h(H, W, bytes_per_px, B):
    """Largest multiple-of-8 divisor of H with ~<=2 MiB of inputs per tile (cap 256 rows),
    preferring a grid with >= 2 steps so both v7x TensorCores get work."""
    if H % 8 != 0:
        return H                                   # fallback: single full-H tile
    budget_rows = max(8, (2 * 1024 * 1024) // max(1, bytes_per_px * W))
    budget_rows = min(budget_rows, 256)
    candidates = [c for c in range(8, H + 1, 8) if H % c == 0 and c <= budget_rows]
    if not candidates:
        candidates = [8]
    tile = max(candidates)
    if B * (H // tile) < 2:                        # keep both TensorCores busy on v7x
        smaller = [c for c in candidates if B * (H // c) >= 2]
        if smaller:
            tile = max(smaller)
    return tile


def edge_aware_tv(depth: jax.Array, rgb: jax.Array, tile_h: int | None = None) -> jax.Array:
    """depth: [B, H, W, 1], rgb: [B, H, W, 3] -> scalar loss (matches PyTorch)."""
    B, H, W, _ = depth.shape

    d = depth[..., 0]                                   # [B, H, W], free view, native dtype
    r = jnp.transpose(rgb, (0, 3, 1, 2))                # [B, 3, H, W]; fusable into input DMA

    bytes_per_px = depth.dtype.itemsize + 3 * rgb.dtype.itemsize
    if tile_h is None or tile_h <= 0 or H % tile_h != 0:
        tile_h = _pick_tile_h(H, W, bytes_per_px, B)
    nt = H // tile_h

    sub = 8 if tile_h % 8 == 0 else tile_h
    lane = 128 if W % 128 == 0 else W

    n_px = B * H * W
    out_bytes = 2 * B * nt * sub * lane * 4
    cost = pl.CostEstimate(flops=30 * n_px,
                           transcendentals=2 * n_px,
                           bytes_accessed=bytes_per_px * n_px + out_bytes)

    # VMEM: 2x double-buffered inputs + ~12 live (tile_h, W) f32 temporaries + outputs.
    tile_px = tile_h * W
    in_bytes = bytes_per_px * tile_px
    vmem_need = 2 * in_bytes + 12 * tile_px * 4 + 4 * sub * lane * 4 + (2 << 20)
    vmem_limit = int(min(48 * 1024 * 1024, max(16 * 1024 * 1024, vmem_need)))

    sx, sy = pl.pallas_call(
        _edge_tv_kernel,
        out_shape=(
            jax.ShapeDtypeStruct((B, nt, sub, lane), jnp.float32),
            jax.ShapeDtypeStruct((B, nt, sub, lane), jnp.float32),
        ),
        grid=(B, nt),
        in_specs=[
            pl.BlockSpec((1, tile_h, W), lambda b, t: (b, t, 0)),
            pl.BlockSpec((1, 3, tile_h, W), lambda b, t: (b, 0, t, 0)),
        ],
        out_specs=(
            pl.BlockSpec((1, 1, sub, lane), lambda b, t: (b, t, 0, 0)),
            pl.BlockSpec((1, 1, sub, lane), lambda b, t: (b, t, 0, 0)),
        ),
        compiler_params=pltpu.CompilerParams(
            dimension_semantics=("parallel", "parallel"),
            vmem_limit_bytes=vmem_limit,
            allow_input_fusion=[False, True],       # let XLA fuse the rgb transpose
        ),
        cost_estimate=cost,
    )(d, r)

    sum_x = jnp.sum(sx)
    sum_y = jnp.sum(sy)

    # Tiny second pass: y-gradient row pairs that straddle two H-tiles.
    if nt > 1:
        dt = d[:, tile_h - 1:H - 1:tile_h, :].astype(jnp.float32)    # (B, nt-1, W)
        db = d[:, tile_h:H:tile_h, :].astype(jnp.float32)
        rt = rgb[:, tile_h - 1:H - 1:tile_h, :, :].astype(jnp.float32)
        rb = rgb[:, tile_h:H:tile_h, :, :].astype(jnp.float32)
        gdy_b = jnp.abs(dt - db)
        giy_b = jnp.mean(jnp.abs(rt - rb), axis=-1)
        sum_y = sum_y + jnp.sum(gdy_b * jnp.exp(-giy_b))

    mean_x = sum_x / jnp.float32(B * H * (W - 1))
    mean_y = sum_y / jnp.float32(B * (H - 1) * W)
    return mean_x + mean_y


def edge_aware_tv_ref(depth: jax.Array, rgb: jax.Array) -> jax.Array:
    """Pure-JAX reference mirroring the PyTorch forward exactly."""
    grad_depth_x = jnp.abs(depth[..., :, :-1, :] - depth[..., :, 1:, :])
    grad_depth_y = jnp.abs(depth[..., :-1, :, :] - depth[..., 1:, :, :])
    grad_img_x = jnp.mean(jnp.abs(rgb[..., :, :-1, :] - rgb[..., :, 1:, :]),
                          axis=-1, keepdims=True)
    grad_img_y = jnp.mean(jnp.abs(rgb[..., :-1, :, :] - rgb[..., 1:, :, :]),
                          axis=-1, keepdims=True)
    grad_depth_x = grad_depth_x * jnp.exp(-grad_img_x)
    grad_depth_y = grad_depth_y * jnp.exp(-grad_img_y)
    return grad_depth_x.mean() + grad_depth_y.mean()


if __name__ == "__main__":
    key = jax.random.PRNGKey(0)

    # Case 1: module-implied small shape; force tile_h=8 to exercise multi-tile + boundary pass.
    k_d, k_r = jax.random.split(key)
    B, H, W = 2, 16, 16
    depth = jax.random.uniform(k_d, (B, H, W, 1), dtype=jnp.float32) * 10.0
    rgb = jax.random.uniform(k_r, (B, H, W, 3), dtype=jnp.float32)

    out_a = jax.block_until_ready(edge_aware_tv(depth, rgb))              # auto tile
    out_b = jax.block_until_ready(edge_aware_tv(depth, rgb, tile_h=8))    # 2 tiles + boundary pass
    ref = jax.block_until_ready(edge_aware_tv_ref(depth, rgb))
    assert jnp.isfinite(out_a) and jnp.isfinite(out_b), "non-finite kernel output"
    assert jnp.allclose(out_a, ref, rtol=1e-5, atol=1e-6), (out_a, ref)
    assert jnp.allclose(out_b, ref, rtol=1e-5, atol=1e-6), (out_b, ref)

    # Case 2: lane-dense width (W multiple of 128) + several H tiles.
    k_d2, k_r2 = jax.random.split(jax.random.fold_in(key, 1))
    B2, H2, W2 = 2, 32, 128
    depth2 = jax.random.uniform(k_d2, (B2, H2, W2, 1), dtype=jnp.float32) * 5.0
    rgb2 = jax.random.uniform(k_r2, (B2, H2, W2, 3), dtype=jnp.float32)
    out2 = jax.block_until_ready(edge_aware_tv(depth2, rgb2, tile_h=8))
    ref2 = jax.block_until_ready(edge_aware_tv_ref(depth2, rgb2))
    assert jnp.isfinite(out2), "non-finite kernel output"
    assert jnp.allclose(out2, ref2, rtol=1e-5, atol=1e-6), (out2, ref2)

    # Case 3: exercises the lane-group folding (W = 256 -> two 128-lane groups).
    k_d3, k_r3 = jax.random.split(jax.random.fold_in(key, 2))
    B3, H3, W3 = 1, 16, 256
    depth3 = jax.random.uniform(k_d3, (B3, H3, W3, 1), dtype=jnp.float32) * 2.0
    rgb3 = jax.random.uniform(k_r3, (B3, H3, W3, 3), dtype=jnp.float32)
    out3 = jax.block_until_ready(edge_aware_tv(depth3, rgb3, tile_h=8))
    ref3 = jax.block_until_ready(edge_aware_tv_ref(depth3, rgb3))
    assert jnp.isfinite(out3), "non-finite kernel output"
    assert jnp.allclose(out3, ref3, rtol=1e-5, atol=1e-6), (out3, ref3)

    print("KERNEL_OK")
</pallas_src>

<mosaic_0001>
module attributes {stable_mosaic.version = 11 : i64} {
  func.func @_edge_tv_kernel(%arg0: i32, %arg1: i32, %arg2: memref<1x16x16xf32, #tpu.memory_space<vmem>>, %arg3: memref<1x3x16x16xf32, #tpu.memory_space<vmem>>, %arg4: memref<1x1x8x16xf32, #tpu.memory_space<vmem>>, %arg5: memref<1x1x8x16xf32, #tpu.memory_space<vmem>>) attributes {dimension_semantics = [#tpu.dimension_semantics<parallel>, #tpu.dimension_semantics<parallel>], iteration_bounds = array<i64: 2, 1>, scalar_prefetch = 0 : i64, scratch_operands = 0 : i64, tpu.core_type = #tpu.core_type<tc>, window_params = [{transform_indices = @transform_0, window_bounds = array<i64: 1, 16, 16>}, {transform_indices = @transform_1, window_bounds = array<i64: 1, 3, 16, 16>}, {transform_indices = @transform_2, window_bounds = array<i64: 1, 1, 8, 16>}, {transform_indices = @transform_3, window_bounds = array<i64: 1, 1, 8, 16>}]} {
    %c0 = arith.constant 0 : index
    %c0_0 = arith.constant 0 : index
    %c0_1 = arith.constant 0 : index
    %0 = vector.load %arg2[%c0, %c0_0, %c0_1] : memref<1x16x16xf32, #tpu.memory_space<vmem>>, vector<1x16x16xf32>
    %1 = vector.shape_cast %0 : vector<1x16x16xf32> to vector<16x16xf32>
    %c0_2 = arith.constant 0 : index
    %c0_3 = arith.constant 0 : index
    %c0_4 = arith.constant 0 : index
    %c0_5 = arith.constant 0 : index
    %2 = vector.load %arg3[%c0_2, %c0_3, %c0_4, %c0_5] : memref<1x3x16x16xf32, #tpu.memory_space<vmem>>, vector<1x1x16x16xf32>
    %3 = vector.shape_cast %2 : vector<1x1x16x16xf32> to vector<16x16xf32>
    %c0_6 = arith.constant 0 : index
    %c1 = arith.constant 1 : index
    %c0_7 = arith.constant 0 : index
    %c0_8 = arith.constant 0 : index
    %4 = vector.load %arg3[%c0_6, %c1, %c0_7, %c0_8] : memref<1x3x16x16xf32, #tpu.memory_space<vmem>>, vector<1x1x16x16xf32>
    %5 = vector.shape_cast %4 : vector<1x1x16x16xf32> to vector<16x16xf32>
    %c0_9 = arith.constant 0 : index
    %c2 = arith.constant 2 : index
    %c0_10 = arith.constant 0 : index
    %c0_11 = arith.constant 0 : index
    %6 = vector.load %arg3[%c0_9, %c2, %c0_10, %c0_11] : memref<1x3x16x16xf32, #tpu.memory_space<vmem>>, vector<1x1x16x16xf32>
    %7 = vector.shape_cast %6 : vector<1x1x16x16xf32> to vector<16x16xf32>
    %8 = vector.extract_strided_slice %1 {offsets = [0, 1], sizes = [16, 15], strides = [1, 1]} : vector<16x16xf32> to vector<16x15xf32>
    %9 = vector.extract_strided_slice %1 {offsets = [0, 0], sizes = [16, 15], strides = [1, 1]} : vector<16x16xf32> to vector<16x15xf32>
    %10 = arith.subf %8, %9 : vector<16x15xf32>
    %11 = math.absf %10 : vector<16x15xf32>
    %12 = vector.extract_strided_slice %3 {offsets = [0, 1], sizes = [16, 15], strides = [1, 1]} : vector<16x16xf32> to vector<16x15xf32>
    %13 = vector.extract_strided_slice %3 {offsets = [0, 0], sizes = [16, 15], strides = [1, 1]} : vector<16x16xf32> to vector<16x15xf32>
    %14 = arith.subf %12, %13 : vector<16x15xf32>
    %15 = math.absf %14 : vector<16x15xf32>
    %16 = vector.extract_strided_slice %5 {offsets = [0, 1], sizes = [16, 15], strides = [1, 1]} : vector<16x16xf32> to vector<16x15xf32>
    %17 = vector.extract_strided_slice %5 {offsets = [0, 0], sizes = [16, 15], strides = [1, 1]} : vector<16x16xf32> to vector<16x15xf32>
    %18 = arith.subf %16, %17 : vector<16x15xf32>
    %19 = math.absf %18 : vector<16x15xf32>
    %20 = arith.addf %15, %19 : vector<16x15xf32>
    %21 = vector.extract_strided_slice %7 {offsets = [0, 1], sizes = [16, 15], strides = [1, 1]} : vector<16x16xf32> to vector<16x15xf32>
    %22 = vector.extract_strided_slice %7 {offsets = [0, 0], sizes = [16, 15], strides = [1, 1]} : vector<16x16xf32> to vector<16x15xf32>
    %23 = arith.subf %21, %22 : vector<16x15xf32>
    %24 = math.absf %23 : vector<16x15xf32>
    %25 = arith.addf %20, %24 : vector<16x15xf32>
    %cst = arith.constant -0.333333343 : f32
    %26 = vector.broadcast %cst : f32 to vector<16x15xf32>
    %27 = arith.mulf %25, %26 : vector<16x15xf32>
    %cst_12 = arith.constant 0.000000e+00 : f32
    %28 = vector.broadcast %cst_12 : f32 to vector<16x1xf32>
    %29 = tpu.concatenate %11, %28 in 1 : vector<16x15xf32>, vector<16x1xf32> -> vector<16x16xf32>
    %30 = tpu.concatenate %27, %28 in 1 : vector<16x15xf32>, vector<16x1xf32> -> vector<16x16xf32>
    %31 = math.exp %30 : vector<16x16xf32>
    %32 = arith.mulf %29, %31 : vector<16x16xf32>
    %33 = vector.extract_strided_slice %1 {offsets = [1, 0], sizes = [15, 16], strides = [1, 1]} : vector<16x16xf32> to vector<15x16xf32>
    %34 = vector.extract_strided_slice %1 {offsets = [0, 0], sizes = [15, 16], strides = [1, 1]} : vector<16x16xf32> to vector<15x16xf32>
    %35 = arith.subf %33, %34 : vector<15x16xf32>
    %36 = math.absf %35 : vector<15x16xf32>
    %37 = vector.extract_strided_slice %3 {offsets = [1, 0], sizes = [15, 16], strides = [1, 1]} : vector<16x16xf32> to vector<15x16xf32>
    %38 = vector.extract_strided_slice %3 {offsets = [0, 0], sizes = [15, 16], strides = [1, 1]} : vector<16x16xf32> to vector<15x16xf32>
    %39 = arith.subf %37, %38 : vector<15x16xf32>
    %40 = math.absf %39 : vector<15x16xf32>
    %41 = vector.extract_strided_slice %5 {offsets = [1, 0], sizes = [15, 16], strides = [1, 1]} : vector<16x16xf32> to vector<15x16xf32>
    %42 = vector.extract_strided_slice %5 {offsets = [0, 0], sizes = [15, 16], strides = [1, 1]} : vector<16x16xf32> to vector<15x16xf32>
    %43 = arith.subf %41, %42 : vector<15x16xf32>
    %44 = math.absf %43 : vector<15x16xf32>
    %45 = arith.addf %40, %44 : vector<15x16xf32>
    %46 = vector.extract_strided_slice %7 {offsets = [1, 0], sizes = [15, 16], strides = [1, 1]} : vector<16x16xf32> to vector<15x16xf32>
    %47 = vector.extract_strided_slice %7 {offsets = [0, 0], sizes = [15, 16], strides = [1, 1]} : vector<16x16xf32> to vector<15x16xf32>
    %48 = arith.subf %46, %47 : vector<15x16xf32>
    %49 = math.absf %48 : vector<15x16xf32>
    %50 = arith.addf %45, %49 : vector<15x16xf32>
    %cst_13 = arith.constant -0.333333343 : f32
    %51 = vector.broadcast %cst_13 : f32 to vector<15x16xf32>
    %52 = arith.mulf %50, %51 : vector<15x16xf32>
    %cst_14 = arith.constant 0.000000e+00 : f32
    %53 = vector.broadcast %cst_14 : f32 to vector<1x16xf32>
    %54 = tpu.concatenate %36, %53 in 0 : vector<15x16xf32>, vector<1x16xf32> -> vector<16x16xf32>
    %55 = tpu.concatenate %52, %53 in 0 : vector<15x16xf32>, vector<1x16xf32> -> vector<16x16xf32>
    %56 = math.exp %55 : vector<16x16xf32>
    %57 = arith.mulf %54, %56 : vector<16x16xf32>
    %58 = vector.extract_strided_slice %32 {offsets = [0, 0], sizes = [8, 16], strides = [1, 1]} : vector<16x16xf32> to vector<8x16xf32>
    %59 = vector.extract_strided_slice %32 {offsets = [8, 0], sizes = [8, 16], strides = [1, 1]} : vector<16x16xf32> to vector<8x16xf32>
    %60 = arith.addf %58, %59 : vector<8x16xf32>
    %c0_15 = arith.constant 0 : index
    %c0_16 = arith.constant 0 : index
    %c0_17 = arith.constant 0 : index
    %c0_18 = arith.constant 0 : index
    %61 = vector.load %arg4[%c0_15, %c0_16, %c0_17, %c0_18] : memref<1x1x8x16xf32, #tpu.memory_space<vmem>>, vector<1x1x8x16xf32>
    %62 = vector.shape_cast %61 : vector<1x1x8x16xf32> to vector<8x16xf32>
    %63 = vector.shape_cast %60 : vector<8x16xf32> to vector<1x1x8x16xf32>
    tpu.vector_store %arg4[%c0_15, %c0_16, %c0_17, %c0_18], %63 {strides = array<i32>} : memref<1x1x8x16xf32, #tpu.memory_space<vmem>>, vector<1x1x8x16xf32>,
    %64 = vector.extract_strided_slice %57 {offsets = [0, 0], sizes = [8, 16], strides = [1, 1]} : vector<16x16xf32> to vector<8x16xf32>
    %65 = vector.extract_strided_slice %57 {offsets = [8, 0], sizes = [8, 16], strides = [1, 1]} : vector<16x16xf32> to vector<8x16xf32>
    %66 = arith.addf %64, %65 : vector<8x16xf32>
    %c0_19 = arith.constant 0 : index
    %c0_20 = arith.constant 0 : index
    %c0_21 = arith.constant 0 : index
    %c0_22 = arith.constant 0 : index
    %67 = vector.load %arg5[%c0_19, %c0_20, %c0_21, %c0_22] : memref<1x1x8x16xf32, #tpu.memory_space<vmem>>, vector<1x1x8x16xf32>
    %68 = vector.shape_cast %67 : vector<1x1x8x16xf32> to vector<8x16xf32>
    %69 = vector.shape_cast %66 : vector<8x16xf32> to vector<1x1x8x16xf32>
    tpu.vector_store %arg5[%c0_19, %c0_20, %c0_21, %c0_22], %69 {strides = array<i32>} : memref<1x1x8x16xf32, #tpu.memory_space<vmem>>, vector<1x1x8x16xf32>,
    return
  }
  func.func @transform_0(%arg0: i32, %arg1: i32) -> (i32, i32, i32) {
    %c0_i32 = arith.constant 0 : i32
    %c0_i32_0 = arith.constant 0 : i32
    return %arg0, %arg1, %c0_i32 : i32, i32, i32
  }
  func.func @transform_1(%arg0: i32, %arg1: i32) -> (i32, i32, i32, i32) {
    %c0_i32 = arith.constant 0 : i32
    %c0_i32_0 = arith.constant 0 : i32
    %c0_i32_1 = arith.constant 0 : i32
    return %arg0, %c0_i32, %arg1, %c0_i32_0 : i32, i32, i32, i32
  }
  func.func @transform_2(%arg0: i32, %arg1: i32) -> (i32, i32, i32, i32) {
    %c0_i32 = arith.constant 0 : i32
    %c0_i32_0 = arith.constant 0 : i32
    %c0_i32_1 = arith.constant 0 : i32
    return %arg0, %arg1, %c0_i32, %c0_i32_0 : i32, i32, i32, i32
  }
  func.func @transform_3(%arg0: i32, %arg1: i32) -> (i32, i32, i32, i32) {
    %c0_i32 = arith.constant 0 : i32
    %c0_i32_0 = arith.constant 0 : i32
    %c0_i32_1 = arith.constant 0 : i32
    return %arg0, %arg1, %c0_i32, %c0_i32_0 : i32, i32, i32, i32
  }
}

</mosaic_0001>

<llo_original>
// kernel: tpu_custom_call.1
$region0: #{tpu_custom_call.1}
  #allocation0 [shape = 'u32[]', space=smem, size = 0x4, offset = 0x4, fixed_abs, tag = 'smem constant byte address 0x4 - core index']
  #allocation1 [shape = 'u32[72,128]{1,0:T(1,128)}', space=vmem, size = 0x9000, scoped, tag = 'internal scratch']
  %s0 = inlined_call_operand.hbm [shape: f32[2,16,16], index: 0, kind: input, shape index: {}]
  %s1 = inlined_call_operand.hbm [shape: f32[2,3,16,16], index: 1, kind: input, shape index: {}]
  %s2 = inlined_call_operand.hbm [shape: f32[2,1,8,16], index: 2, kind: output, shape index: {0}]
  %s3 = inlined_call_operand.hbm [shape: f32[2,1,8,16], index: 3, kind: output, shape index: {1}]
  %4 = xla_tuple %s2, %s3
  %s5 = sld [smem:[#allocation0]]
  $region57: #{tpu_custom_call.1} parent=0
    _
  %s7 = ssub.s32 1, %s5
  %s8 = scalar_select 0, %s7, %s5
  $region1: #{tpu_custom_call.1} parent=0
    #allocation2 [shape = 'u8[16384]{0}', space=vmem, size = 0x4000, scoped, tag = 'input window, operand 0']
    #allocation3 [shape = 's32[2]{0}', space=sflag, size = 0x8, scoped, tag = 'scoped memory for tpu_custom_call.1']
    #allocation4 [shape = 's32[2]{0}', space=sflag, size = 0x8, scoped, tag = 'scoped memory for tpu_custom_call.1']
    #allocation5 [shape = 'u8[49152]{0}', space=vmem, size = 0xc000, scoped, tag = 'input window, operand 1']
    #allocation6 [shape = 's32[2]{0}', space=sflag, size = 0x8, scoped, tag = 'scoped memory for tpu_custom_call.1']
    #allocation7 [shape = 'u8[8192]{0}', space=vmem, size = 0x2000, scoped, tag = 'output window, operand 0']
    #allocation8 [shape = 'u8[8192]{0}', space=vmem, size = 0x2000, scoped, tag = 'output window, operand 1']
    #allocation9 [shape = 's32[2]{0}', space=sflag, size = 0x8, scoped, tag = 'scoped memory for tpu_custom_call.1']
    %9 = vsyncpa [#allocation3], 0
    %s10 = scalar_lea.sflag [#allocation3], 1
    %11 = vsyncpa %s10, 0
    %12 = vsyncpa [#allocation6], 0
    %s13 = scalar_lea.sflag [#allocation6], 1
    %14 = vsyncpa %s13, 0
    %15 = vsyncpa [#allocation4], 0
    %s16 = scalar_lea.sflag [#allocation4], 1
    %17 = vsyncpa %s16, 0
    %18 = vsyncpa [#allocation9], 0
    %s19 = scalar_lea.sflag [#allocation9], 1
    %20 = vsyncpa %s19, 0
    loop: start=0, step=1, limit=4
    $region2: #{tpu_custom_call.1} parent=1 // loop_pre_header
      _
    $region3: #{tpu_custom_call.1} parent=1 // loop_header
      %s22 = sphi 0, %s26
      %p23 = scmp.ge.s32.totalorder %s22, 4
      %s29 = sphi 0, %s41
      %s30 = sphi 0, %s37
      %s31 = sphi 0, %s29
      %s32 = sphi 0, %s30
      %s33 = sphi 0, %s31
      %s34 = sphi 0, %s32
      %s46 = sphi 0, %s48
      %s49 = sphi 0, %s46
      %s50 = sphi 0, %s49
      %s66 = sphi 0, %s50
      %s74 = sphi 0, %s76
      %s77 = sphi 0, %s74
      %s78 = sphi 0, %s77
      %s94 = sphi 0, %s78
      %s102 = sphi 0, %s104
      %s105 = sphi 0, %s102
      %s106 = sphi 0, %s105
      %s122 = sphi 0, %s106
      %s130 = sphi 0, %s132
      %s133 = sphi 0, %s130
      %s134 = sphi 0, %s133
      %s150 = sphi 0, %s134
    $region4: #{tpu_custom_call.1} parent=1 // loop_header_branch
      %25 = sbr.rel (%p23) target = $region8
    $region5: #{tpu_custom_call.1} parent=1 // loop_body
      %s27 = ssub.s32 %s22, 1
      %s28 = ssub.s32 %s22, 2
      %s35 = sadd.s32 1, %s30
      %p36 = scmp.ge.s32.totalorder %s35, 1
      %s37 = scalar_select %p36, 0, %s35
      %s38 = sadd.s32 1, %s29
      %s39 = scalar_select %p36, %s38, %s29
      %p40 = scmp.ge.s32.totalorder %s39, 2
      %s41 = scalar_select %p40, 0, %s39
      %s42 = ssub.s32 %s29, %s41
      %s43 = ssub.s32 %s30, %s37
      %s44 = sor.u32 %s42, %s43
      %p45 = scmp.eq.s32.totalorder %s44, 0
      %s47 = sadd.s32 %s46, 1
      %s48 = scalar_select %p45, %s46, %s47
      %p51 = pneg %p45
      %p52 = scmp.eq.s32.totalorder %s22, 1
      %p53 = por %p51, %p52
      %p54 = scmp.ne.s32.totalorder %s46, %s49
      %p55 = scmp.eq.s32.totalorder %s22, 0
      %p56 = por %p54, %p55
      %p57 = scmp.ne.s32.totalorder %s46, %s49
      %p58 = scmp.eq.s32.totalorder %s27, 1
      %p59 = por %p57, %p58
      %p60 = scmp.ne.s32.totalorder %s49, %s50
      %p61 = scmp.eq.s32.totalorder %s27, 0
      %p62 = por %p60, %p61
      %p63 = scmp.ne.s32.totalorder %s49, %s50
      %p64 = scmp.eq.s32.totalorder %s28, 1
      %p65 = por %p63, %p64
      %p67 = scmp.ne.s32.totalorder %s50, %s66
      %p68 = scmp.eq.s32.totalorder %s28, 0
      %p69 = por %p67, %p68
      %s70 = ssub.s32 %s29, %s41
      %s71 = ssub.s32 %s30, %s37
      %s72 = sor.u32 %s70, %s71
      %p73 = scmp.eq.s32.totalorder %s72, 0
      %s75 = sadd.s32 %s74, 1
      %s76 = scalar_select %p73, %s74, %s75
      %p79 = pneg %p73
      %p80 = scmp.eq.s32.totalorder %s22, 1
      %p81 = por %p79, %p80
      %p82 = scmp.ne.s32.totalorder %s74, %s77
      %p83 = scmp.eq.s32.totalorder %s22, 0
      %p84 = por %p82, %p83
      %p85 = scmp.ne.s32.totalorder %s74, %s77
      %p86 = scmp.eq.s32.totalorder %s27, 1
      %p87 = por %p85, %p86
      %p88 = scmp.ne.s32.totalorder %s77, %s78
      %p89 = scmp.eq.s32.totalorder %s27, 0
      %p90 = por %p88, %p89
      %p91 = scmp.ne.s32.totalorder %s77, %s78
      %p92 = scmp.eq.s32.totalorder %s28, 1
      %p93 = por %p91, %p92
      %p95 = scmp.ne.s32.totalorder %s78, %s94
      %p96 = scmp.eq.s32.totalorder %s28, 0
      %p97 = por %p95, %p96
      %s98 = ssub.s32 %s29, %s41
      %s99 = ssub.s32 %s30, %s37
      %s100 = sor.u32 %s98, %s99
      %p101 = scmp.eq.s32.totalorder %s100, 0
      %s103 = sadd.s32 %s102, 1
      %s104 = scalar_select %p101, %s102, %s103
      %p107 = pneg %p101
      %p108 = scmp.eq.s32.totalorder %s22, 1
      %p109 = por %p107, %p108
      %p110 = scmp.ne.s32.totalorder %s102, %s105
      %p111 = scmp.eq.s32.totalorder %s22, 0
      %p112 = por %p110, %p111
      %p113 = scmp.ne.s32.totalorder %s102, %s105
      %p114 = scmp.eq.s32.totalorder %s27, 1
      %p115 = por %p113, %p114
      %p116 = scmp.ne.s32.totalorder %s105, %s106
      %p117 = scmp.eq.s32.totalorder %s27, 0
      %p118 = por %p116, %p117
      %p119 = scmp.ne.s32.totalorder %s105, %s106
      %p120 = scmp.eq.s32.totalorder %s28, 1
      %p121 = por %p119, %p120
      %p123 = scmp.ne.s32.totalorder %s106, %s122
      %p124 = scmp.eq.s32.totalorder %s28, 0
      %p125 = por %p123, %p124
      %s126 = ssub.s32 %s29, %s41
      %s127 = ssub.s32 %s30, %s37
      %s128 = sor.u32 %s126, %s127
      %p129 = scmp.eq.s32.totalorder %s128, 0
      %s131 = sadd.s32 %s130, 1
      %s132 = scalar_select %p129, %s130, %s131
      %p135 = pneg %p129
      %p136 = scmp.eq.s32.totalorder %s22, 1
      %p137 = por %p135, %p136
      %p138 = scmp.ne.s32.totalorder %s130, %s133
      %p139 = scmp.eq.s32.totalorder %s22, 0
      %p140 = por %p138, %p139
      %p141 = scmp.ne.s32.totalorder %s130, %s133
      %p142 = scmp.eq.s32.totalorder %s27, 1
      %p143 = por %p141, %p142
      %p144 = scmp.ne.s32.totalorder %s133, %s134
      %p145 = scmp.eq.s32.totalorder %s27, 0
      %p146 = por %p144, %p145
      %p147 = scmp.ne.s32.totalorder %s133, %s134
      %p148 = scmp.eq.s32.totalorder %s28, 1
      %p149 = por %p147, %p148
      %p151 = scmp.ne.s32.totalorder %s134, %s150
      %p152 = scmp.eq.s32.totalorder %s28, 0
      %p153 = por %p151, %p152
      %p154 = scmp.le.s32.totalorder 1, %s22
      %p155 = scmp.lt.s32.totalorder %s22, 3
      %p156 = pnand %p154, %p155
      %p157 = pneg %p156
      // Predicated region
      $region9: #{tpu_custom_call.1} parent=5 // pred_check
        _
      $region10: #{tpu_custom_call.1} parent=5 // pred_check_branch
        %159 = sbr.rel (%p156) target = $region12
      $region11: #{tpu_custom_call.1} parent=5 // pred_region
        %s160 = ssub.s32 %s22, 1
      $region12: #{tpu_custom_call.1} parent=5 // pred_fallthru
        _
      %p161 = scmp.lt.s32.totalorder %s22, 2
      // Predicated region
      $region13: #{tpu_custom_call.1} parent=5 // pred_check
        %p162 = pneg %p161
      $region14: #{tpu_custom_call.1} parent=5 // pred_check_branch
        %164 = sbr.rel (%p162) target = $region16
      $region15: #{tpu_custom_call.1} parent=5 // pred_region
        // Predicated region
        $region17: #{tpu_custom_call.1} parent=15 // pred_check
          %p165 = pneg %p56
        $region18: #{tpu_custom_call.1} parent=15 // pred_check_branch
          %167 = sbr.rel (%p165) target = $region20
        $region19: #{tpu_custom_call.1} parent=15 // pred_region
          %s168 = sand.u32 %s46, 1
          %s169 = scalar_lea.sflag [#allocation3], %s168
          %s170 = sand.u32 %s46, 1
          %s171 = smul.addr %s170, 16
          %s172 = scalar_lea.vmem [#allocation2], %s171
          %s173 = smul.u32 2, %s30
          %175 = vsyncadd %s169, 0
          %s176 = smul.addr %s29, 2
          %s177 = sadd.s32 %s173, %s176
          %s178 = smul.addr %s177, 8
          %s179 = scalar_lea.hbm %s0, %s178
          %s180 = sshll.u32 %s179, 4
          %s181 = int_to_ptr.hbm [resolvable:$true] %s180
          %s182 = sshll.u32 %s172, 4
          %s183 = int_to_ptr.vmem [resolvable:$true] %s182
          %188 = dma.hbm_to_vmem [thread:$0]  %s181, 256, %s183, %s169, 128, 128, 8
        $region20: #{tpu_custom_call.1} parent=15 // pred_fallthru
          _
        // Predicated region
        $region21: #{tpu_custom_call.1} parent=15 // pred_check
          %p189 = pneg %p84
        $region22: #{tpu_custom_call.1} parent=15 // pred_check_branch
          %191 = sbr.rel (%p189) target = $region24
        $region23: #{tpu_custom_call.1} parent=15 // pred_region
          %s192 = sand.u32 %s74, 1
          %s193 = scalar_lea.sflag [#allocation6], %s192
          %s194 = sand.u32 %s74, 1
          %s195 = smul.addr %s194, 48
          %s196 = scalar_lea.vmem [#allocation5], %s195
          %s197 = smul.u32 2, %s30
          %199 = vsyncadd %s193, 0
          %s200 = smul.addr %s29, 6
          %s201 = sadd.s32 %s197, %s200
          %s202 = smul.addr %s201, 8
          %s203 = scalar_lea.hbm %s1, %s202
          %s204 = sshll.u32 %s203, 4
          %s205 = int_to_ptr.hbm [resolvable:$true] %s204
          %s206 = sshll.u32 %s196, 4
          %s207 = int_to_ptr.vmem [resolvable:$true] %s206
          %212 = dma.hbm_to_vmem [thread:$0]  %s205, 768, %s207, %s193, 128, 128, 8
        $region24: #{tpu_custom_call.1} parent=15 // pred_fallthru
          _
      $region16: #{tpu_custom_call.1} parent=5 // pred_fallthru
        _
      %p213 = scmp.le.s32.totalorder 1, %s22
      %p214 = scmp.lt.s32.totalorder %s22, 3
      %p215 = pnand %p213, %p214
      %p216 = pneg %p215
      // Predicated region
      $region25: #{tpu_custom_call.1} parent=5 // pred_check
        _
      $region26: #{tpu_custom_call.1} parent=5 // pred_check_branch
        %218 = sbr.rel (%p215) target = $region28
      $region27: #{tpu_custom_call.1} parent=5 // pred_region
        %s219 = ssub.s32 %s22, 1
        %s220 = sand.u32 %s49, 1
        %s221 = scalar_lea.sflag [#allocation3], %s220
        %s222 = sand.u32 %s49, 1
        %s223 = smul.addr %s222, 16
        %s224 = scalar_lea.vmem [#allocation2], %s223
        // Predicated region
        $region29: #{tpu_custom_call.1} parent=27 // pred_check
          %p225 = pneg %p62
        $region30: #{tpu_custom_call.1} parent=27 // pred_check_branch
          %227 = sbr.rel (%p225) target = $region32
        $region31: #{tpu_custom_call.1} parent=27 // pred_region
          %229 = dma.done %s221, 256
        $region32: #{tpu_custom_call.1} parent=27 // pred_fallthru
          _
        %s230 = sand.u32 %s77, 1
        %s231 = scalar_lea.sflag [#allocation6], %s230
        %s232 = sand.u32 %s77, 1
        %s233 = smul.addr %s232, 48
        %s234 = scalar_lea.vmem [#allocation5], %s233
        // Predicated region
        $region33: #{tpu_custom_call.1} parent=27 // pred_check
          %p235 = pneg %p90
        $region34: #{tpu_custom_call.1} parent=27 // pred_check_branch
          %237 = sbr.rel (%p235) target = $region36
        $region35: #{tpu_custom_call.1} parent=27 // pred_region
          %239 = dma.done %s231, 768
        $region36: #{tpu_custom_call.1} parent=27 // pred_fallthru
          _
        %s240 = sand.u32 %s49, 1
        %s241 = scalar_lea.sflag [#allocation3], %s240
        %s242 = sand.u32 %s49, 1
        %s243 = smul.addr %s242, 16
        %s244 = scalar_lea.vmem [#allocation2], %s243
        %p245 = pneg %p62
        %p246 = pneg %p59
        %s247 = sand.u32 %s77, 1
        %s248 = scalar_lea.sflag [#allocation6], %s247
        %s249 = sand.u32 %s77, 1
        %s250 = smul.addr %s249, 48
        %s251 = scalar_lea.vmem [#allocation5], %s250
        %p252 = pneg %p90
        %p253 = pneg %p87
        %p254 = pneg %p118
        %p255 = pneg %p115
        %s256 = sand.u32 %s105, 1
        %s257 = scalar_lea.sflag [#allocation4], %s256
        %s258 = sand.u32 %s105, 1
        %s259 = smul.addr %s258, 8
        %s260 = scalar_lea.vmem [#allocation7], %s259
        %p261 = pneg %p146
        %p262 = pneg %p143
        %s263 = sand.u32 %s133, 1
        %s264 = scalar_lea.sflag [#allocation9], %s263
        %s265 = sand.u32 %s133, 1
        %s266 = smul.addr %s265, 8
        %s267 = scalar_lea.vmem [#allocation8], %s266
        %s268 = smul.u32 2, %s32
        %s269 = smul.u32 2, %s32
        %v270 = vld [vmem:[%s224] sm:$0xff]
        %v271 = vld [vmem:[%s224 + $0x8] sm:$0xff]
        %v272 = vld [vmem:[%s234] sm:$0xff]
        %v273 = vld [vmem:[%s234 + $0x8] sm:$0xff]
        %s274 = scalar_lea.vmem %s234, 16 [#allocation5]
        %v275 = vld [vmem:[%s274] sm:$0xff]
        %v276 = vld [vmem:[%s274 + $0x8] sm:$0xff]
        %s277 = scalar_lea.vmem %s234, 32 [#allocation5]
        %v278 = vld [vmem:[%s277] sm:$0xff]
        %v279 = vld [vmem:[%s277 + $0x8] sm:$0xff]
        %282 = vrot.lane.b32.xlu0 %v270, 1
        %v283 = vpop.permute.xlu0 %282
        %284 = vrot.lane.b32.xlu0 %v271, 1
        %v285 = vpop.permute.xlu0 %284
        %v288 = vsub.f32 %v270, %v283
        %v289 = vsub.f32 %v271, %v285
        %v290 = vand.u32 2147483647, %v288
        %v291 = vand.u32 2147483647, %v289
        %294 = vrot.lane.b32.xlu0 %v272, 1
        %v295 = vpop.permute.xlu0 %294
        %296 = vrot.lane.b32.xlu0 %v273, 1
        %v297 = vpop.permute.xlu0 %296
        %v300 = vsub.f32 %v272, %v295
        %v301 = vsub.f32 %v273, %v297
        %v302 = vand.u32 2147483647, %v300
        %v303 = vand.u32 2147483647, %v301
        %306 = vrot.lane.b32.xlu0 %v275, 1
        %v307 = vpop.permute.xlu0 %306
        %308 = vrot.lane.b32.xlu0 %v276, 1
        %v309 = vpop.permute.xlu0 %308
        %v312 = vsub.f32 %v275, %v307
        %v313 = vsub.f32 %v276, %v309
        %v314 = vand.u32 2147483647, %v312
        %v315 = vand.u32 2147483647, %v313
        %v316 = vadd.f32 %v302, %v314
        %v317 = vadd.f32 %v303, %v315
        %320 = vrot.lane.b32.xlu0 %v278, 1
        %v321 = vpop.permute.xlu0 %320
        %322 = vrot.lane.b32.xlu0 %v279, 1
        %v323 = vpop.permute.xlu0 %322
        %v326 = vsub.f32 %v278, %v321
        %v327 = vsub.f32 %v279, %v323
        %v328 = vand.u32 2147483647, %v326
        %v329 = vand.u32 2147483647, %v327
        %v330 = vadd.f32 %v316, %v328
        %v331 = vadd.f32 %v317, %v329
        %v332 = vmul.f32 %v330, -0.33333334
        %v333 = vmul.f32 %v331, -0.33333334
        %336 = vrot.lane.b32.xlu0 %v290, 127
        %v337 = vpop.permute.xlu0 %336
        %338 = vrot.lane.b32.xlu0 %v291, 127
        %v339 = vpop.permute.xlu0 %338
        %vm342 = vcmask 121856
        %v343 = vsel %vm342, %v337, 0.0
        %v344 = vsel %vm342, %v339, 0.0
        %347 = vrot.lane.b32.xlu0 %v332, 127
        %v348 = vpop.permute.xlu0 %347
        %349 = vrot.lane.b32.xlu0 %v333, 127
        %v350 = vpop.permute.xlu0 %349
        %v353 = vsel %vm342, %v348, 0.0
        %v354 = vsel %vm342, %v350, 0.0
        %v355 = vmul.f32 %v353, 1.442695
        %v356 = vpow.pop %v355
        %v357 = vmul.f32 %v354, 1.442695
        %v358 = vpow.pop %v357
        %v359 = vmul.f32 %v343, %v356
        %v360 = vmul.f32 %v344, %v358
        %vm361 = vcmask 1040384
        %v362 = vrot.slane %v270, 7
        %v363 = vrot.slane %v271, 7
        %v364 = vsel %vm361, %v362, %v363
        %v367 = vsub.f32 %v270, %v362
        %v368 = vsub.f32 %v271, %v364
        %v369 = vand.u32 2147483647, %v367
        %v370 = vand.u32 2147483647, %v368
        %v371 = vrot.slane %v272, 7
        %v372 = vrot.slane %v273, 7
        %v373 = vsel %vm361, %v371, %v372
        %v376 = vsub.f32 %v272, %v371
        %v377 = vsub.f32 %v273, %v373
        %v378 = vand.u32 2147483647, %v376
        %v379 = vand.u32 2147483647, %v377
        %v380 = vrot.slane %v275, 7
        %v381 = vrot.slane %v276, 7
        %v382 = vsel %vm361, %v380, %v381
        %v385 = vsub.f32 %v275, %v380
        %v386 = vsub.f32 %v276, %v382
        %v387 = vand.u32 2147483647, %v385
        %v388 = vand.u32 2147483647, %v386
        %v389 = vadd.f32 %v378, %v387
        %v390 = vadd.f32 %v379, %v388
        %v391 = vrot.slane %v278, 7
        %v392 = vrot.slane %v279, 7
        %v393 = vsel %vm361, %v391, %v392
        %v396 = vsub.f32 %v278, %v391
        %v397 = vsub.f32 %v279, %v393
        %v398 = vand.u32 2147483647, %v396
        %v399 = vand.u32 2147483647, %v397
        %v400 = vadd.f32 %v389, %v398
        %v401 = vadd.f32 %v390, %v399
        %v402 = vmul.f32 %v400, -0.33333334
        %v403 = vmul.f32 %v401, -0.33333334
        %vm406 = vcmask 1046528
        %v407 = vrot.slane %v369, 1
        %v408 = vrot.slane %v370, 1
        %v409 = vsel %vm406, %v407, %v408
        %v412 = vsel %vm406, %v408, 0.0
        %v415 = vrot.slane %v402, 1
        %v416 = vrot.slane %v403, 1
        %v417 = vsel %vm406, %v415, %v416
        %v420 = vsel %vm406, %v416, 0.0
        %v421 = vmul.f32 %v417, 1.442695
        %v422 = vpow.pop %v421
        %v423 = vmul.f32 %v420, 1.442695
        %v424 = vpow.pop %v423
        %v425 = vmul.f32 %v409, %v422
        %v426 = vmul.f32 %v412, %v424
        %v427 = vadd.f32 %v359, %v360
        %vm428 = vcmask 130048
        %429 = vst.msk [vmem:[%s260] sm:$0xff] %vm428, %v427
        %v430 = vadd.f32 %v425, %v426
        %431 = vst.msk [vmem:[%s267] sm:$0xff] %vm428, %v430
        %s432 = sand.u32 %s105, 1
        %s433 = scalar_lea.sflag [#allocation4], %s432
        %s434 = sand.u32 %s105, 1
        %s435 = smul.addr %s434, 8
        %s436 = scalar_lea.vmem [#allocation7], %s435
        %s437 = sand.u32 %s133, 1
        %s438 = scalar_lea.sflag [#allocation9], %s437
        %s439 = sand.u32 %s133, 1
        %s440 = smul.addr %s439, 8
        %s441 = scalar_lea.vmem [#allocation8], %s440
        // Predicated region
        $region37: #{tpu_custom_call.1} parent=27 // pred_check
          %p442 = pneg %p115
        $region38: #{tpu_custom_call.1} parent=27 // pred_check_branch
          %444 = sbr.rel (%p442) target = $region40
        $region39: #{tpu_custom_call.1} parent=27 // pred_region
          %446 = vsyncadd %s433, 0
          %s447 = sadd.s32 %s32, %s31
          %s448 = smul.addr %s447, 8
          %s449 = scalar_lea.hbm %s2, %s448
          %s451 = sshll.u32 %s436, 4
          %s452 = int_to_ptr.vmem [resolvable:$true] %s451
          %s453 = sshll.u32 %s449, 4
          %s454 = int_to_ptr.hbm [resolvable:$true] %s453
          %456 = dma.vmem_to_hbm [thread:$0]  %s452, 128, %s454, %s433
        $region40: #{tpu_custom_call.1} parent=27 // pred_fallthru
          _
        // Predicated region
        $region41: #{tpu_custom_call.1} parent=27 // pred_check
          %p457 = pneg %p143
        $region42: #{tpu_custom_call.1} parent=27 // pred_check_branch
          %459 = sbr.rel (%p457) target = $region44
        $region43: #{tpu_custom_call.1} parent=27 // pred_region
          %461 = vsyncadd %s438, 0
          %s462 = sadd.s32 %s32, %s31
          %s463 = smul.addr %s462, 8
          %s464 = scalar_lea.hbm %s3, %s463
          %s466 = sshll.u32 %s441, 4
          %s467 = int_to_ptr.vmem [resolvable:$true] %s466
          %s468 = sshll.u32 %s464, 4
          %s469 = int_to_ptr.hbm [resolvable:$true] %s468
          %471 = dma.vmem_to_hbm [thread:$0]  %s467, 128, %s469, %s438
        $region44: #{tpu_custom_call.1} parent=27 // pred_fallthru
          _
      $region28: #{tpu_custom_call.1} parent=5 // pred_fallthru
        _
      %p472 = scmp.le.s32.totalorder 2, %s22
      // Predicated region
      $region45: #{tpu_custom_call.1} parent=5 // pred_check
        %p473 = pneg %p472
      $region46: #{tpu_custom_call.1} parent=5 // pred_check_branch
        %475 = sbr.rel (%p473) target = $region48
      $region47: #{tpu_custom_call.1} parent=5 // pred_region
        %s476 = ssub.s32 %s22, 2
        // Predicated region
        $region49: #{tpu_custom_call.1} parent=47 // pred_check
          %p477 = pneg %p121
        $region50: #{tpu_custom_call.1} parent=47 // pred_check_branch
          %479 = sbr.rel (%p477) target = $region52
        $region51: #{tpu_custom_call.1} parent=47 // pred_region
          %s480 = sand.u32 %s106, 1
          %s481 = scalar_lea.sflag [#allocation4], %s480
          %s482 = sand.u32 %s106, 1
          %s483 = smul.addr %s482, 8
          %s484 = scalar_lea.vmem [#allocation7], %s483
          %486 = dma.done %s481, 128
        $region52: #{tpu_custom_call.1} parent=47 // pred_fallthru
          _
        // Predicated region
        $region53: #{tpu_custom_call.1} parent=47 // pred_check
          %p487 = pneg %p149
        $region54: #{tpu_custom_call.1} parent=47 // pred_check_branch
          %489 = sbr.rel (%p487) target = $region56
        $region55: #{tpu_custom_call.1} parent=47 // pred_region
          %s490 = sand.u32 %s134, 1
          %s491 = scalar_lea.sflag [#allocation9], %s490
          %s492 = sand.u32 %s134, 1
          %s493 = smul.addr %s492, 8
          %s494 = scalar_lea.vmem [#allocation8], %s493
          %496 = dma.done %s491, 128
        $region56: #{tpu_custom_call.1} parent=47 // pred_fallthru
          _
      $region48: #{tpu_custom_call.1} parent=5 // pred_fallthru
        _
    $region6: #{tpu_custom_call.1} parent=1 // loop_footer
      %s26 = sadd.s32 1, %s22
    $region7: #{tpu_custom_call.1} parent=1 // loop_footer_branch
      %21 = sbr.rel target = $region3
    $region8: #{tpu_custom_call.1} parent=1 // loop_exit
      _
    %497 = vsyncpa [#allocation3], 1
    %s498 = scalar_lea.sflag [#allocation3], 1
    %499 = vsyncpa %s498, 1
    %500 = vsyncpa [#allocation6], 1
    %s501 = scalar_lea.sflag [#allocation6], 1
    %502 = vsyncpa %s501, 1
    %503 = vsyncpa [#allocation4], 1
    %s504 = scalar_lea.sflag [#allocation4], 1
    %505 = vsyncpa %s504, 1
    %506 = vsyncpa [#allocation9], 1
    %s507 = scalar_lea.sflag [#allocation9], 1
    %508 = vsyncpa %s507, 1

</llo_original>
